<compile_context>
chip_gen: v6e
topology: v6e:2x2x1
jax: 0.10.0
libtpu: 0.0.40
codegen_flags: <defaults>
</compile_context>

<pallas_src>
import functools

import jax
import jax.numpy as jnp
from jax import lax
from jax.experimental import pallas as pl
from jax.experimental.pallas import tpu as pltpu

_LANE = 128
_VMEM_LIMIT = 32 * 1024 * 1024          # plenty for <=12 MiB of double-buffered blocks
_MAX_BLOCK_COLS = 512 * 1024            # keeps per-value unroll (<=4K vregs) sane
_MIN_BLOCK_COLS = 32 * 1024
_BLOCK_BYTES_BUDGET = 12 * 1024 * 1024  # double-buffered block payload per kernel


def _cdiv(a, b):
    return (a + b - 1) // b


def _pick_block_cols(n_ch, total_len, block_cols):
    """Column-block size (time samples per grid step)."""
    if block_cols is not None:
        cols = max(_LANE, (int(block_cols) // _LANE) * _LANE)
    else:
        # 2 x (input + mono) f32 buffers per column: 8 * (C + 1) bytes.
        cols = _BLOCK_BYTES_BUDGET // (8 * (n_ch + 1))
        cols = max(_MIN_BLOCK_COLS, (cols // 1024) * 1024)
        cols = min(cols, _MAX_BLOCK_COLS)
    if total_len <= cols:
        cols = total_len  # single block covering the whole (unpadded) waveform
    return cols


# -----------------------------------------------------------------------------
# Per-block peak write: reduce |mono| of this block to one value and store it in
# this block's (1,1,1) slot.  Only the (possibly partial) last block needs the
# iota mask against the true length; the decision is made at trace time.
# -----------------------------------------------------------------------------
def _write_block_peak(abs_vals, peak_ref, *, block_cols, total_len):
    t = pl.program_id(0)
    if total_len % block_cols == 0:
        peak_ref[0] = jnp.max(abs_vals, axis=1, keepdims=True)
    else:
        last = pl.num_programs(0) - 1

        @pl.when(t < last)
        def _():
            peak_ref[0] = jnp.max(abs_vals, axis=1, keepdims=True)

        @pl.when(t == last)
        def _():
            pos = lax.broadcasted_iota(jnp.int32, abs_vals.shape, 1) + t * block_cols
            masked = jnp.where(pos < total_len, abs_vals, 0.0)
            peak_ref[0] = jnp.max(masked, axis=1, keepdims=True)


# -----------------------------------------------------------------------------
# Kernel 1a (C > 1): downmix to mono + per-block peak.
# -----------------------------------------------------------------------------
def _downmix_peak_kernel(wav_ref, mono_ref, peak_ref, *, n_ch, block_cols, total_len):
    acc = wav_ref[pl.ds(0, 1), :]                       # (1, cols)
    for c in range(1, n_ch):                            # static, tiny channel count
        acc = acc + wav_ref[pl.ds(c, 1), :]
    mono = acc * jnp.float32(1.0 / n_ch)
    mono_ref[...] = mono
    _write_block_peak(jnp.abs(mono), peak_ref,
                      block_cols=block_cols, total_len=total_len)


# -----------------------------------------------------------------------------
# Kernel 1b (C == 1): peak-only read pass (no mono write).
# -----------------------------------------------------------------------------
def _peak_kernel(wav_ref, peak_ref, *, block_cols, total_len):
    _write_block_peak(jnp.abs(wav_ref[...]), peak_ref,
                      block_cols=block_cols, total_len=total_len)


# -----------------------------------------------------------------------------
# Kernel 2: elementwise rescale.  Scalar scale lives in SMEM.
# -----------------------------------------------------------------------------
def _scale_kernel(scale_ref, src_ref, out_ref):
    out_ref[...] = src_ref[...] * scale_ref[0]


def sox_effects_forward(wav: jax.Array,
                        sample_rate: int,
                        *,
                        target_sample_rate: int,
                        norm_db: float,
                        sil_threshold: float,
                        sil_duration: float,
                        block_cols: int | None = None) -> jax.Array:
    """Pallas implementation of SoxEffects.forward (downmix + peak-norm path).

    wav: (C, T) float32.  Returns mono, peak-normalized waveform of shape (1, T).
    """
    assert wav.ndim == 2
    # TODO(synk): resampling path (sample_rate != target_sample_rate) not implemented.
    assert sample_rate == target_sample_rate

    wav = wav.astype(jnp.float32)
    C, T = wav.shape
    cols = _pick_block_cols(C, T, block_cols)
    num_blocks = _cdiv(T, cols)

    cparams = pltpu.CompilerParams(
        dimension_semantics=("parallel",),
        vmem_limit_bytes=_VMEM_LIMIT,
    )
    peaks_shape = jax.ShapeDtypeStruct((num_blocks, 1, 1), jnp.float32)
    peaks_spec = pl.BlockSpec((1, 1, 1), lambda t: (t, 0, 0))

    def wave_spec(rows):
        return pl.BlockSpec((rows, cols), lambda t: (0, t))

    # ---- pass 1: downmix (if needed) + per-block max|mono| -----------------------
    if C == 1:
        peaks = pl.pallas_call(
            functools.partial(_peak_kernel, block_cols=cols, total_len=T),
            out_shape=peaks_shape,
            grid_spec=pltpu.PrefetchScalarGridSpec(
                num_scalar_prefetch=0,
                grid=(num_blocks,),
                in_specs=[wave_spec(1)],
                out_specs=peaks_spec,
            ),
            compiler_params=cparams,
        )(wav)
        mono = wav
    else:
        mono, peaks = pl.pallas_call(
            functools.partial(_downmix_peak_kernel,
                              n_ch=C, block_cols=cols, total_len=T),
            out_shape=(jax.ShapeDtypeStruct((1, T), jnp.float32), peaks_shape),
            grid_spec=pltpu.PrefetchScalarGridSpec(
                num_scalar_prefetch=0,
                grid=(num_blocks,),
                in_specs=[wave_spec(C)],
                out_specs=[wave_spec(1), peaks_spec],
            ),
            compiler_params=cparams,
        )(wav)

    # ---- tiny on-device glue: combine per-block peaks, compute scale -------------
    peak = jnp.max(peaks)
    target = jnp.float32(10.0 ** (norm_db / 20.0))
    scale = jnp.where(peak > 0.0, target / peak, jnp.float32(1.0))
    scale = scale.reshape(1).astype(jnp.float32)

    # ---- pass 2: rescale straight into the unpadded (1, T) output ----------------
    out = pl.pallas_call(
        _scale_kernel,
        out_shape=jax.ShapeDtypeStruct((1, T), jnp.float32),
        grid_spec=pltpu.PrefetchScalarGridSpec(
            num_scalar_prefetch=0,
            grid=(num_blocks,),
            in_specs=[
                pl.BlockSpec(memory_space=pltpu.MemorySpace.SMEM),  # scalar scale
                wave_spec(1),
            ],
            out_specs=wave_spec(1),
        ),
        compiler_params=cparams,
    )(scale, mono)
    return out


def _reference(wav, norm_db):
    mono = jnp.mean(wav.astype(jnp.float32), axis=0, keepdims=True)
    peak = jnp.max(jnp.abs(mono))
    scale = jnp.where(peak > 0, (10.0 ** (norm_db / 20.0)) / peak, 1.0)
    return mono * scale


if __name__ == "__main__":
    SAMPLE_RATE = 16000
    NORM_DB = -3.0
    SIL_THRESHOLD = 1.0
    SIL_DURATION = 0.1

    key = jax.random.PRNGKey(0)
    k1, k2, k3 = jax.random.split(key, 3)

    def run(w, bc=None):
        return jax.block_until_ready(sox_effects_forward(
            w, SAMPLE_RATE,
            target_sample_rate=SAMPLE_RATE, norm_db=NORM_DB,
            sil_threshold=SIL_THRESHOLD, sil_duration=SIL_DURATION,
            block_cols=bc))

    # Test 1: stereo, auto-sized single block.
    wav1 = jax.random.normal(k1, (2, 2048), dtype=jnp.float32) * 0.1
    out1 = run(wav1)
    ref1 = _reference(wav1, NORM_DB)
    assert out1.shape == (1, 2048)
    assert jnp.allclose(out1, ref1, atol=1e-5, rtol=1e-5)

    # Test 2: stereo, multi-block with a ragged last block (partial-block masking).
    wav2 = jax.random.normal(k2, (2, 1000), dtype=jnp.float32) * 0.05
    out2 = run(wav2, bc=256)
    ref2 = _reference(wav2, NORM_DB)
    assert out2.shape == (1, 1000)
    assert jnp.allclose(out2, ref2, atol=1e-5, rtol=1e-5)

    # Test 3: mono fast path, multi-block, ragged tail.
    wav3 = jax.random.normal(k3, (1, 1500), dtype=jnp.float32) * 0.05
    out3 = run(wav3, bc=512)
    ref3 = _reference(wav3, NORM_DB)
    assert out3.shape == (1, 1500)
    assert jnp.allclose(out3, ref3, atol=1e-5, rtol=1e-5)

    print("KERNEL_OK")
</pallas_src>

<mosaic_0001>
module attributes {stable_mosaic.version = 11 : i64} {
  func.func @_downmix_peak_kernel(%arg0: i32, %arg1: memref<2x2048xf32, #tpu.memory_space<vmem>>, %arg2: memref<1x2048xf32, #tpu.memory_space<vmem>>, %arg3: memref<1x1x1xf32, #tpu.memory_space<vmem>>) attributes {dimension_semantics = [#tpu.dimension_semantics<parallel>], iteration_bounds = array<i64: 1>, scalar_prefetch = 0 : i64, scratch_operands = 0 : i64, tpu.core_type = #tpu.core_type<tc>, window_params = [{transform_indices = @transform_0, window_bounds = array<i64: 2, 2048>}, {transform_indices = @transform_1, window_bounds = array<i64: 1, 2048>}, {transform_indices = @transform_2, window_bounds = array<i64: 1, 1, 1>}]} {
    %c0 = arith.constant 0 : index
    %c0_0 = arith.constant 0 : index
    %0 = vector.load %arg1[%c0, %c0_0] : memref<2x2048xf32, #tpu.memory_space<vmem>>, vector<1x2048xf32>
    %c1 = arith.constant 1 : index
    %c0_1 = arith.constant 0 : index
    %1 = vector.load %arg1[%c1, %c0_1] : memref<2x2048xf32, #tpu.memory_space<vmem>>, vector<1x2048xf32>
    %2 = arith.addf %0, %1 : vector<1x2048xf32>
    %cst = arith.constant 5.000000e-01 : f32
    %3 = vector.broadcast %cst : f32 to vector<1x2048xf32>
    %4 = arith.mulf %2, %3 : vector<1x2048xf32>
    %c0_2 = arith.constant 0 : index
    %c0_3 = arith.constant 0 : index
    %5 = vector.load %arg2[%c0_2, %c0_3] : memref<1x2048xf32, #tpu.memory_space<vmem>>, vector<1x2048xf32>
    tpu.vector_store %arg2[%c0_2, %c0_3], %4 {strides = array<i32>} : memref<1x2048xf32, #tpu.memory_space<vmem>>, vector<1x2048xf32>,
    %6 = math.absf %4 : vector<1x2048xf32>
    %cst_4 = arith.constant dense<0xFF800000> : vector<1xf32>
    %7 = vector.multi_reduction <maximumf>, %6, %cst_4 [1] : vector<1x2048xf32> to vector<1xf32>
    %8 = vector.shape_cast %7 : vector<1xf32> to vector<1x1xf32>
    %c0_5 = arith.constant 0 : index
    %c0_6 = arith.constant 0 : index
    %c0_7 = arith.constant 0 : index
    %9 = vector.load %arg3[%c0_5, %c0_6, %c0_7] : memref<1x1x1xf32, #tpu.memory_space<vmem>>, vector<1x1x1xf32>
    %10 = vector.shape_cast %9 : vector<1x1x1xf32> to vector<1x1xf32>
    %11 = vector.shape_cast %8 : vector<1x1xf32> to vector<1x1x1xf32>
    tpu.vector_store %arg3[%c0_5, %c0_6, %c0_7], %11 {strides = array<i32>} : memref<1x1x1xf32, #tpu.memory_space<vmem>>, vector<1x1x1xf32>,
    return
  }
  func.func @transform_0(%arg0: i32) -> (i32, i32) {
    %c0_i32 = arith.constant 0 : i32
    %c0_i32_0 = arith.constant 0 : i32
    return %c0_i32, %arg0 : i32, i32
  }
  func.func @transform_1(%arg0: i32) -> (i32, i32) {
    %c0_i32 = arith.constant 0 : i32
    %c0_i32_0 = arith.constant 0 : i32
    return %c0_i32, %arg0 : i32, i32
  }
  func.func @transform_2(%arg0: i32) -> (i32, i32, i32) {
    %c0_i32 = arith.constant 0 : i32
    %c0_i32_0 = arith.constant 0 : i32
    %c0_i32_1 = arith.constant 0 : i32
    return %arg0, %c0_i32, %c0_i32_0 : i32, i32, i32
  }
}

</mosaic_0001>

<llo_original>
// kernel: tpu_custom_call.1
$region0: #{tpu_custom_call.1}
  #allocation0 [shape = 'u32[]', space=smem, size = 0x4, offset = 0x4, fixed_abs, tag = 'smem constant byte address 0x4 - core index']
  #allocation1 [shape = 'u32[144,128]{1,0:T(1,128)}', space=vmem, size = 0x12000, scoped, tag = 'internal scratch']
  %s0 = inlined_call_operand.hbm [shape: f32[2,2048], index: 0, kind: input, shape index: {}]
  %s1 = inlined_call_operand.hbm [shape: f32[1,2048], index: 1, kind: output, shape index: {0}]
  %s2 = inlined_call_operand.hbm [shape: f32[1,1,1], index: 2, kind: output, shape index: {1}]
  %3 = xla_tuple %s1, %s2
  %s4 = sld [smem:[#allocation0]]
  $region26: #{tpu_custom_call.1} parent=0
    _
  %s6 = ssub.s32 1, %s4
  %s7 = scalar_select 0, %s6, %s4
  $region1: #{tpu_custom_call.1} parent=0
    #allocation2 [shape = 'u8[16384]{0}', space=vmem, size = 0x4000, scoped, tag = 'input window, operand 0, single buffered']
    #allocation3 [shape = 's32[1]{0}', space=sflag, size = 0x4, scoped, tag = 'scoped memory for tpu_custom_call.1']
    #allocation4 [shape = 's32[1]{0}', space=sflag, size = 0x4, scoped, tag = 'scoped memory for tpu_custom_call.1']
    #allocation5 [shape = 'u8[8192]{0}', space=vmem, size = 0x2000, scoped, tag = 'output window, operand 0, single buffered']
    #allocation6 [shape = 'u8[512]{0}', space=vmem, size = 0x400, scoped, tag = 'output window, operand 1, single buffered']
    #allocation7 [shape = 's32[1]{0}', space=sflag, size = 0x4, scoped, tag = 'scoped memory for tpu_custom_call.1']
    %8 = vsyncpa [#allocation3], 0
    %9 = vsyncpa [#allocation4], 0
    %10 = vsyncpa [#allocation7], 0
    // Predicated region
    $region2: #{tpu_custom_call.1} parent=1 // pred_check
      _
    $region3: #{tpu_custom_call.1} parent=1 // pred_check_branch
      %12 = sbr.rel (0) target = $region5
    $region4: #{tpu_custom_call.1} parent=1 // pred_region
      %s14 = ssub.s32 512, 512
      %15 = vsyncadd [#allocation3], %s14
      %s17 = sshll.u32 [#allocation2], 4
      %s18 = int_to_ptr.vmem [resolvable:$true] %s17
      %20 = dma.hbm_to_vmem [thread:$0]  %s0, 512, %s18, [#allocation3]
    $region5: #{tpu_custom_call.1} parent=1 // pred_fallthru
      _
    // Predicated region
    $region6: #{tpu_custom_call.1} parent=1 // pred_check
      _
    $region7: #{tpu_custom_call.1} parent=1 // pred_check_branch
      %22 = sbr.rel (0) target = $region9
    $region8: #{tpu_custom_call.1} parent=1 // pred_region
      %23 = dma.done [#allocation3], 512
    $region9: #{tpu_custom_call.1} parent=1 // pred_fallthru
      _
    %v24 = vld [vmem:[#allocation2] ss:$2 sm:$0xff]
    %s25 = scalar_lea.vmem [#allocation2], 16
    %v26 = vld [vmem:[%s25] ss:$2 sm:$0xff]
    %s27 = scalar_lea.vmem [#allocation2], 1
    %v28 = vld [vmem:[%s27] ss:$2 sm:$0xff]
    %s29 = scalar_lea.vmem [#allocation2], 17
    %v30 = vld [vmem:[%s29] ss:$2 sm:$0xff]
    %v31 = vadd.f32 %v24, %v28
    %v32 = vadd.f32 %v26, %v30
    %v33 = vmul.f32 %v31, 0.5
    %v34 = vmul.f32 %v32, 0.5
    %35 = vst [vmem:[#allocation5] sm:$0xff] %v33
    %36 = vst [vmem:[#allocation5 + $0x8] sm:$0xff] %v34
    %v37 = vand.u32 2147483647, %v33
    %v38 = vand.u32 2147483647, %v34
    %v41 = vlaneseq
    %v42 = vshrl.u32 %v41, 7
    %v43 = vsub.s32 0, %v42
    %v44 = vrot.slane %v37, %v43
    %v45 = vlaneseq
    %v46 = vshrl.u32 %v45, 7
    %v47 = vsub.s32 1, %v46
    %v48 = vrot.slane %v37, %v47
    %v49 = vlaneseq
    %v50 = vshrl.u32 %v49, 7
    %v51 = vsub.s32 2, %v50
    %v52 = vrot.slane %v37, %v51
    %v53 = vlaneseq
    %v54 = vshrl.u32 %v53, 7
    %v55 = vsub.s32 3, %v54
    %v56 = vrot.slane %v37, %v55
    %v57 = vlaneseq
    %v58 = vshrl.u32 %v57, 7
    %v59 = vsub.s32 4, %v58
    %v60 = vrot.slane %v37, %v59
    %v61 = vlaneseq
    %v62 = vshrl.u32 %v61, 7
    %v63 = vsub.s32 5, %v62
    %v64 = vrot.slane %v37, %v63
    %v65 = vlaneseq
    %v66 = vshrl.u32 %v65, 7
    %v67 = vsub.s32 6, %v66
    %v68 = vrot.slane %v37, %v67
    %v69 = vlaneseq
    %v70 = vshrl.u32 %v69, 7
    %v71 = vsub.s32 7, %v70
    %v72 = vrot.slane %v37, %v71
    %v73 = vlaneseq
    %v74 = vshrl.u32 %v73, 7
    %v75 = vsub.s32 0, %v74
    %v76 = vrot.slane %v38, %v75
    %v77 = vlaneseq
    %v78 = vshrl.u32 %v77, 7
    %v79 = vsub.s32 1, %v78
    %v80 = vrot.slane %v38, %v79
    %v81 = vlaneseq
    %v82 = vshrl.u32 %v81, 7
    %v83 = vsub.s32 2, %v82
    %v84 = vrot.slane %v38, %v83
    %v85 = vlaneseq
    %v86 = vshrl.u32 %v85, 7
    %v87 = vsub.s32 3, %v86
    %v88 = vrot.slane %v38, %v87
    %v89 = vlaneseq
    %v90 = vshrl.u32 %v89, 7
    %v91 = vsub.s32 4, %v90
    %v92 = vrot.slane %v38, %v91
    %v93 = vlaneseq
    %v94 = vshrl.u32 %v93, 7
    %v95 = vsub.s32 5, %v94
    %v96 = vrot.slane %v38, %v95
    %v97 = vlaneseq
    %v98 = vshrl.u32 %v97, 7
    %v99 = vsub.s32 6, %v98
    %v100 = vrot.slane %v38, %v99
    %v101 = vlaneseq
    %v102 = vshrl.u32 %v101, 7
    %v103 = vsub.s32 7, %v102
    %v104 = vrot.slane %v38, %v103
    %vm121 = vcmask 1040384
    %v122 = vsel %vm121, %v44, -inf
    %v123 = vsel %vm121, %v48, -inf
    %v124 = vsel %vm121, %v52, -inf
    %v125 = vsel %vm121, %v56, -inf
    %v126 = vsel %vm121, %v60, -inf
    %v127 = vmax.f32 %v122, %v126
    %v128 = vsel %vm121, %v64, -inf
    %v129 = vmax.f32 %v123, %v128
    %v130 = vsel %vm121, %v68, -inf
    %v131 = vmax.f32 %v124, %v130
    %v132 = vsel %vm121, %v72, -inf
    %v133 = vmax.f32 %v125, %v132
    %v134 = vsel %vm121, %v76, -inf
    %v135 = vmax.f32 %v127, %v134
    %v136 = vsel %vm121, %v80, -inf
    %v137 = vmax.f32 %v129, %v136
    %v138 = vsel %vm121, %v84, -inf
    %v139 = vmax.f32 %v131, %v138
    %v140 = vsel %vm121, %v88, -inf
    %v141 = vmax.f32 %v133, %v140
    %v142 = vsel %vm121, %v92, -inf
    %v143 = vmax.f32 %v135, %v142
    %v144 = vsel %vm121, %v96, -inf
    %v145 = vmax.f32 %v137, %v144
    %v146 = vsel %vm121, %v100, -inf
    %v147 = vmax.f32 %v139, %v146
    %v148 = vsel %vm121, %v104, -inf
    %v149 = vmax.f32 %v141, %v148
    %v150 = vmax.f32 %v143, %v145
    %v151 = vmax.f32 %v147, %v149
    %v152 = vmax.f32 %v150, %v151
    %153 = vmax.xlane.f32.xlu0 %v152
    %v154 = vpop.xlane.xlu0 %153
    %vm155 = vcmask 0
    %156 = vst.msk [vmem:[#allocation6] sm:$0x1] %vm155, %v154
    // Predicated region
    $region10: #{tpu_custom_call.1} parent=1 // pred_check
      _
    $region11: #{tpu_custom_call.1} parent=1 // pred_check_branch
      %158 = sbr.rel (0) target = $region13
    $region12: #{tpu_custom_call.1} parent=1 // pred_region
      %s160 = ssub.s32 256, 256
      %161 = vsyncadd [#allocation4], %s160
      %s163 = sshll.u32 [#allocation5], 4
      %s164 = int_to_ptr.vmem [resolvable:$true] %s163
      %166 = dma.vmem_to_hbm [thread:$0]  %s164, 256, %s1, [#allocation4]
    $region13: #{tpu_custom_call.1} parent=1 // pred_fallthru
      _
    // Predicated region
    $region14: #{tpu_custom_call.1} parent=1 // pred_check
      _
    $region15: #{tpu_custom_call.1} parent=1 // pred_check_branch
      %168 = sbr.rel (0) target = $region17
    $region16: #{tpu_custom_call.1} parent=1 // pred_region
      %s170 = ssub.s32 16, 16
      %171 = vsyncadd [#allocation7], %s170
      %s173 = sshll.u32 [#allocation6], 4
      %s174 = int_to_ptr.vmem [resolvable:$true] %s173
      %176 = dma.vmem_to_hbm [thread:$0]  %s174, 16, %s2, [#allocation7]
    $region17: #{tpu_custom_call.1} parent=1 // pred_fallthru
      _
    // Predicated region
    $region18: #{tpu_custom_call.1} parent=1 // pred_check
      _
    $region19: #{tpu_custom_call.1} parent=1 // pred_check_branch
      %178 = sbr.rel (0) target = $region21
    $region20: #{tpu_custom_call.1} parent=1 // pred_region
      %179 = dma.done [#allocation4], 256
    $region21: #{tpu_custom_call.1} parent=1 // pred_fallthru
      _
    // Predicated region
    $region22: #{tpu_custom_call.1} parent=1 // pred_check
      _
    $region23: #{tpu_custom_call.1} parent=1 // pred_check_branch
      %181 = sbr.rel (0) target = $region25
    $region24: #{tpu_custom_call.1} parent=1 // pred_region
      %182 = dma.done [#allocation7], 16
    $region25: #{tpu_custom_call.1} parent=1 // pred_fallthru
      _
    %183 = vsyncpa [#allocation3], 1
    %184 = vsyncpa [#allocation4], 1
    %185 = vsyncpa [#allocation7], 1

</llo_original>
